<compile_context>
chip_gen: v7x
topology: tpu7x:2x2x1
jax: 0.10.0
libtpu: 0.0.40
codegen_flags: <defaults>
</compile_context>

<pallas_src>
import jax
import jax.numpy as jnp
from jax.experimental import pallas as pl
from jax.experimental.pallas import tpu as pltpu

_LANE = 128


def glu_kernel(x_ref, w_ref, b_ref, o_ref):
    # x_ref : (TB, C, tn)   pixel tile of TB batch elements (pixels on lanes)
    # w_ref : (2C, C)       fused 1x1-conv weight (lhs rows then rhs rows)
    # b_ref : (2C, 1)       fused bias (f32), broadcast along the pixel (lane) axis
    # o_ref : (TB, C, tn)
    tb, C, _ = o_ref.shape
    w = w_ref[...]
    bias = b_ref[...]
    for bi in range(tb):  # static unroll; TB is small (1 or B for tiny HW)
        # One fused MXU matmul producing both halves; f32 accumulation.
        y = jnp.dot(w, x_ref[bi], preferred_element_type=jnp.float32) + bias
        lhs = y[:C, :]                               # (C, tn)
        rhs = y[C:, :]                               # (C, tn)
        o_ref[bi] = (lhs * jax.nn.sigmoid(rhs)).astype(o_ref.dtype)


def _pick_tiles(B, C, HW, x_bytes):
    """Choose (tb, tn): lane-dense tiles, VMEM-friendly, >=2 grid steps if possible."""
    # Keep a single-batch x block around <=2 MiB so double-buffered in+out stays far
    # below the 16/32 MiB scoped-VMEM defaults while DMAs stay ~0.5-2 MiB each.
    max_tn = max(_LANE, ((2 << 20) // max(1, C * x_bytes) // _LANE) * _LANE)
    max_tn = min(max_tn, 8192)
    tn = HW if HW <= max_tn else max_tn              # full extent or multiple of 128

    # Fold the whole batch into one block when it is tiny (few pixels per image):
    # turns an overhead-dominated multi-step launch into one well-fed step.
    tb = B if B * C * tn * x_bytes <= (1 << 20) else 1

    # v7x megacore: keep at least 2 "parallel" grid steps when the pixel axis can
    # be split into multiple-of-128 tiles (v5e/v6e are unaffected).
    steps = (B // tb) * pl.cdiv(HW, tn)
    if steps < 2 and HW > _LANE:
        tn = max(_LANE, pl.cdiv(pl.cdiv(HW, 2), _LANE) * _LANE)
    return tb, tn


def glu_forward(x_nchw, conv_weight, conv_bias, *, out_dtype=None):
    """GLU forward.

    x_nchw:      (B, C, H, W)   consumed in its incoming dtype (no wrapper cast)
    conv_weight: (2C, C, 1, 1)  PyTorch Conv2d weight layout
    conv_bias:   (2C,)
    out_dtype:   optionally jnp.bfloat16 to halve the HBM write stream.
    """
    B, C, H, W = x_nchw.shape
    HW = H * W
    x_dtype = x_nchw.dtype
    if out_dtype is None:
        out_dtype = x_dtype

    # Free row-major reshape (no data movement): pixels land on the last (lane) axis.
    x_flat = x_nchw.reshape(B, C, HW)

    # Fused 1x1-conv params: one (2C, C) weight (tiny; cast to x's dtype) and one
    # (2C, 1) f32 bias added in the f32 accumulator.
    w = conv_weight[:, :, 0, 0].astype(x_dtype)
    b = conv_bias.reshape(2 * C, 1).astype(jnp.float32)

    x_bytes = jnp.dtype(x_dtype).itemsize
    out_bytes = jnp.dtype(out_dtype).itemsize
    tb, tn = _pick_tiles(B, C, HW, x_bytes)
    grid = (pl.cdiv(B, tb), pl.cdiv(HW, tn))

    # Single-buffer the grid-invariant weight/bias once the weight is big enough
    # for the double-buffered copy to matter (v7x: 64 MiB VMEM).
    w_bytes = 2 * C * C * x_bytes
    single_buffer_weights = w_bytes > (1 << 20)
    if single_buffer_weights:
        wb_mode = pl.Buffered(1)
        w_spec = pl.BlockSpec((2 * C, C), lambda bi, pi: (0, 0), pipeline_mode=wb_mode)
        b_spec = pl.BlockSpec((2 * C, 1), lambda bi, pi: (0, 0), pipeline_mode=wb_mode)
    else:
        w_spec = pl.BlockSpec((2 * C, C), lambda bi, pi: (0, 0))
        b_spec = pl.BlockSpec((2 * C, 1), lambda bi, pi: (0, 0))

    # VMEM footprint estimate; only raise the scoped limit when actually needed.
    vmem_est = (2 * tb * C * tn * (x_bytes + out_bytes)           # double-buffered x/out
                + (1 if single_buffer_weights else 2) * (w_bytes + 2 * C * 4))
    vmem_limit = min(int(vmem_est * 3 // 2) + (1 << 20), 64 << 20) \
        if vmem_est > (24 << 20) else None

    # TODO(synk): bump the x spec to pipeline_mode=pl.Buffered(3) only if an xprof
    # trace ever shows exposed x-DMA at grid-step boundaries.
    out_flat = pl.pallas_call(
        glu_kernel,
        out_shape=jax.ShapeDtypeStruct((B, C, HW), out_dtype),
        grid_spec=pltpu.PrefetchScalarGridSpec(
            num_scalar_prefetch=0,
            grid=grid,
            in_specs=[
                pl.BlockSpec((tb, C, tn), lambda bi, pi: (bi, 0, pi)),
                w_spec,
                b_spec,
            ],
            out_specs=pl.BlockSpec((tb, C, tn), lambda bi, pi: (bi, 0, pi)),
        ),
        compiler_params=pltpu.CompilerParams(
            dimension_semantics=("parallel", "parallel"),
            vmem_limit_bytes=vmem_limit),
    )(x_flat, w, b)

    # Free reshape back to NCHW.
    return out_flat.reshape(B, C, H, W)


def glu_reference(x_nchw, conv_weight, conv_bias):
    """Pure-JAX reference mirroring the PyTorch module."""
    C = x_nchw.shape[1]
    w_mat = conv_weight[:, :, 0, 0]                  # (2C, C)
    y = jnp.einsum("bchw,oc->bohw", x_nchw, w_mat) + conv_bias[None, :, None, None]
    lhs, rhs = y[:, :C], y[:, C:]
    return lhs * jax.nn.sigmoid(rhs)


if __name__ == "__main__":
    key = jax.random.PRNGKey(0)
    B, dim, H, W = 2, 32, 16, 16                     # HW = 256 pixels per batch elem

    k_x, k_w, k_b = jax.random.split(key, 3)
    x = jax.random.normal(k_x, (B, dim, H, W), dtype=jnp.float32)
    # Deterministic synthetic Conv2d(dim, 2*dim, kernel_size=1) parameters.
    conv_weight = 0.1 * jax.random.normal(k_w, (2 * dim, dim, 1, 1), dtype=jnp.float32)
    conv_bias = 0.1 * jax.random.normal(k_b, (2 * dim,), dtype=jnp.float32)

    ref = glu_reference(x, conv_weight, conv_bias)

    # Default path: f32 in / f32 out, bit-comparable to the reference.
    out = glu_forward(x, conv_weight, conv_bias)
    out = jax.block_until_ready(out)
    assert out.shape == (B, dim, H, W)
    assert jnp.allclose(out, ref, atol=1e-4, rtol=1e-4), "mismatch vs reference (f32)"

    # Optional reduced write stream: f32 in / bf16 out (looser tolerance by design).
    out_bf16 = glu_forward(x, conv_weight, conv_bias, out_dtype=jnp.bfloat16)
    out_bf16 = jax.block_until_ready(out_bf16)
    assert out_bf16.dtype == jnp.bfloat16
    assert jnp.allclose(out_bf16.astype(jnp.float32), ref, atol=5e-2, rtol=5e-2), \
        "mismatch vs reference (bf16 out)"

    print("KERNEL_OK")
</pallas_src>

<mosaic_0001>
module attributes {stable_mosaic.version = 11 : i64} {
  func.func @glu_kernel(%arg0: i32, %arg1: i32, %arg2: memref<2x32x128xf32, #tpu.memory_space<vmem>>, %arg3: memref<64x32xf32, #tpu.memory_space<vmem>>, %arg4: memref<64x1xf32, #tpu.memory_space<vmem>>, %arg5: memref<2x32x128xf32, #tpu.memory_space<vmem>>) attributes {dimension_semantics = [#tpu.dimension_semantics<parallel>, #tpu.dimension_semantics<parallel>], iteration_bounds = array<i64: 1, 2>, scalar_prefetch = 0 : i64, scratch_operands = 0 : i64, tpu.core_type = #tpu.core_type<tc>, window_params = [{transform_indices = @transform_0, window_bounds = array<i64: 2, 32, 128>}, {pipeline_mode = #tpu.pipeline_mode<synchronous>, transform_indices = @transform_1, window_bounds = array<i64: 64, 32>}, {pipeline_mode = #tpu.pipeline_mode<synchronous>, transform_indices = @transform_2, window_bounds = array<i64: 64, 1>}, {transform_indices = @transform_3, window_bounds = array<i64: 2, 32, 128>}]} {
    %c0 = arith.constant 0 : index
    %c0_0 = arith.constant 0 : index
    %0 = vector.load %arg3[%c0, %c0_0] : memref<64x32xf32, #tpu.memory_space<vmem>>, vector<64x32xf32>
    %c0_1 = arith.constant 0 : index
    %c0_2 = arith.constant 0 : index
    %1 = vector.load %arg4[%c0_1, %c0_2] : memref<64x1xf32, #tpu.memory_space<vmem>>, vector<64x1xf32>
    %c0_3 = arith.constant 0 : index
    %c0_4 = arith.constant 0 : index
    %c0_5 = arith.constant 0 : index
    %2 = vector.load %arg2[%c0_3, %c0_4, %c0_5] : memref<2x32x128xf32, #tpu.memory_space<vmem>>, vector<1x32x128xf32>
    %3 = vector.shape_cast %2 : vector<1x32x128xf32> to vector<32x128xf32>
    %cst = arith.constant dense<0.000000e+00> : vector<64x128xf32>
    %4 = tpu.matmul %0, %3, %cst {dimension_numbers = #tpu.dot_dimension_numbers<[1], [0], [0], [1], [0, 0, 1, 1], [], []>} : vector<64x32xf32>, vector<32x128xf32>, vector<64x128xf32> -> vector<64x128xf32>
    %5 = vector.broadcast %1 : vector<64x1xf32> to vector<64x128xf32>
    %6 = arith.addf %4, %5 : vector<64x128xf32>
    %7 = vector.extract_strided_slice %6 {offsets = [0, 0], sizes = [32, 128], strides = [1, 1]} : vector<64x128xf32> to vector<32x128xf32>
    %8 = vector.extract_strided_slice %6 {offsets = [32, 0], sizes = [32, 128], strides = [1, 1]} : vector<64x128xf32> to vector<32x128xf32>
    %9 = arith.negf %8 : vector<32x128xf32>
    %10 = math.exp %9 : vector<32x128xf32>
    %cst_6 = arith.constant 1.000000e+00 : f32
    %11 = vector.broadcast %cst_6 : f32 to vector<32x128xf32>
    %12 = arith.addf %11, %10 : vector<32x128xf32>
    %13 = arith.divf %11, %12 : vector<32x128xf32>
    %14 = arith.mulf %7, %13 : vector<32x128xf32>
    %c0_7 = arith.constant 0 : index
    %c0_8 = arith.constant 0 : index
    %c0_9 = arith.constant 0 : index
    %15 = vector.load %arg5[%c0_7, %c0_8, %c0_9] : memref<2x32x128xf32, #tpu.memory_space<vmem>>, vector<1x32x128xf32>
    %16 = vector.shape_cast %15 : vector<1x32x128xf32> to vector<32x128xf32>
    %17 = vector.shape_cast %14 : vector<32x128xf32> to vector<1x32x128xf32>
    tpu.vector_store %arg5[%c0_7, %c0_8, %c0_9], %17 {strides = array<i32>} : memref<2x32x128xf32, #tpu.memory_space<vmem>>, vector<1x32x128xf32>,
    %c1 = arith.constant 1 : index
    %c0_10 = arith.constant 0 : index
    %c0_11 = arith.constant 0 : index
    %18 = vector.load %arg2[%c1, %c0_10, %c0_11] : memref<2x32x128xf32, #tpu.memory_space<vmem>>, vector<1x32x128xf32>
    %19 = vector.shape_cast %18 : vector<1x32x128xf32> to vector<32x128xf32>
    %cst_12 = arith.constant dense<0.000000e+00> : vector<64x128xf32>
    %20 = tpu.matmul %0, %19, %cst_12 {dimension_numbers = #tpu.dot_dimension_numbers<[1], [0], [0], [1], [0, 0, 1, 1], [], []>} : vector<64x32xf32>, vector<32x128xf32>, vector<64x128xf32> -> vector<64x128xf32>
    %21 = vector.broadcast %1 : vector<64x1xf32> to vector<64x128xf32>
    %22 = arith.addf %20, %21 : vector<64x128xf32>
    %23 = vector.extract_strided_slice %22 {offsets = [0, 0], sizes = [32, 128], strides = [1, 1]} : vector<64x128xf32> to vector<32x128xf32>
    %24 = vector.extract_strided_slice %22 {offsets = [32, 0], sizes = [32, 128], strides = [1, 1]} : vector<64x128xf32> to vector<32x128xf32>
    %25 = arith.negf %24 : vector<32x128xf32>
    %26 = math.exp %25 : vector<32x128xf32>
    %cst_13 = arith.constant 1.000000e+00 : f32
    %27 = vector.broadcast %cst_13 : f32 to vector<32x128xf32>
    %28 = arith.addf %27, %26 : vector<32x128xf32>
    %29 = arith.divf %27, %28 : vector<32x128xf32>
    %30 = arith.mulf %23, %29 : vector<32x128xf32>
    %c1_14 = arith.constant 1 : index
    %c0_15 = arith.constant 0 : index
    %c0_16 = arith.constant 0 : index
    %31 = vector.load %arg5[%c1_14, %c0_15, %c0_16] : memref<2x32x128xf32, #tpu.memory_space<vmem>>, vector<1x32x128xf32>
    %32 = vector.shape_cast %31 : vector<1x32x128xf32> to vector<32x128xf32>
    %33 = vector.shape_cast %30 : vector<32x128xf32> to vector<1x32x128xf32>
    tpu.vector_store %arg5[%c1_14, %c0_15, %c0_16], %33 {strides = array<i32>} : memref<2x32x128xf32, #tpu.memory_space<vmem>>, vector<1x32x128xf32>,
    return
  }
  func.func @transform_0(%arg0: i32, %arg1: i32) -> (i32, i32, i32) {
    %c0_i32 = arith.constant 0 : i32
    %c0_i32_0 = arith.constant 0 : i32
    return %arg0, %c0_i32, %arg1 : i32, i32, i32
  }
  func.func @transform_1(%arg0: i32, %arg1: i32) -> (i32, i32) {
    %c0_i32 = arith.constant 0 : i32
    %c0_i32_0 = arith.constant 0 : i32
    %c0_i32_1 = arith.constant 0 : i32
    return %c0_i32, %c0_i32_0 : i32, i32
  }
  func.func @transform_2(%arg0: i32, %arg1: i32) -> (i32, i32) {
    %c0_i32 = arith.constant 0 : i32
    %c0_i32_0 = arith.constant 0 : i32
    %c0_i32_1 = arith.constant 0 : i32
    return %c0_i32, %c0_i32_0 : i32, i32
  }
  func.func @transform_3(%arg0: i32, %arg1: i32) -> (i32, i32, i32) {
    %c0_i32 = arith.constant 0 : i32
    %c0_i32_0 = arith.constant 0 : i32
    return %arg0, %c0_i32, %arg1 : i32, i32, i32
  }
}

</mosaic_0001>

<llo_original>
// kernel: tpu_custom_call.1
$region0: #{tpu_custom_call.1}
  #allocation0 [shape = 'u32[]', space=smem, size = 0x4, offset = 0x4, fixed_abs, tag = 'smem constant byte address 0x4 - core index']
  #allocation1 [shape = 'u32[144,128]{1,0:T(1,128)}', space=vmem, size = 0x12000, scoped, tag = 'internal scratch']
  %s0 = inlined_call_operand.vmem [shape: f32[2,32,256], index: 0, kind: input, shape index: {}]
  %s1 = inlined_call_operand.vmem [shape: f32[64,32], index: 1, kind: input, shape index: {}]
  %s2 = inlined_call_operand.vmem [shape: f32[64,1], index: 2, kind: input, shape index: {}]
  %s3 = inlined_call_operand.hbm [shape: f32[2,32,256], index: 3, kind: output, shape index: {}]
  %s4 = sld [smem:[#allocation0]]
  $region83: #{tpu_custom_call.1} parent=0
    _
  %s6 = ssub.s32 1, %s4
  %s7 = scalar_select 0, %s6, %s4
  $region1: #{tpu_custom_call.1} parent=0
    #allocation2 [shape = 'u8[65536]{0}', space=vmem, size = 0x10000, scoped, tag = 'input window, operand 0']
    #allocation3 [shape = 'u8[65536]{0}', space=vmem, size = 0x10000, scoped, tag = 'output window, operand 0']
    #allocation4 [shape = 's32[2]{0}', space=sflag, size = 0x8, scoped, tag = 'scoped memory for tpu_custom_call.1']
    %8 = vsyncpa [#allocation4], 0
    %s9 = scalar_lea.sflag [#allocation4], 1
    %10 = vsyncpa %s9, 0
    loop: start=0, step=1, limit=4
    $region2: #{tpu_custom_call.1} parent=1 // loop_pre_header
      _
    $region3: #{tpu_custom_call.1} parent=1 // loop_header
      %s12 = sphi 0, %s16
      %p13 = scmp.ge.s32.totalorder %s12, 4
      %s19 = sphi 0, %s31
      %s20 = sphi 0, %s27
      %s21 = sphi 0, %s19
      %s22 = sphi 0, %s20
      %s23 = sphi 0, %s21
      %s24 = sphi 0, %s22
      %s36 = sphi 0, %s38
      %s39 = sphi 0, %s36
      %s40 = sphi 0, %s39
      %s56 = sphi 0, %s40
      %s60 = sphi 0, %s60
      %s62 = sphi 0, %s60
      %s63 = sphi 0, %s62
      %s77 = sphi 0, %s63
      %s81 = sphi 0, %s81
      %s83 = sphi 0, %s81
      %s84 = sphi 0, %s83
      %s98 = sphi 0, %s84
      %s106 = sphi 0, %s108
      %s109 = sphi 0, %s106
      %s110 = sphi 0, %s109
      %s126 = sphi 0, %s110
    $region4: #{tpu_custom_call.1} parent=1 // loop_header_branch
      %15 = sbr.rel (%p13) target = $region8
    $region5: #{tpu_custom_call.1} parent=1 // loop_body
      %s17 = ssub.s32 %s12, 1
      %s18 = ssub.s32 %s12, 2
      %s25 = sadd.s32 1, %s20
      %p26 = scmp.ge.s32.totalorder %s25, 2
      %s27 = scalar_select %p26, 0, %s25
      %s28 = sadd.s32 1, %s19
      %s29 = scalar_select %p26, %s28, %s19
      %p30 = scmp.ge.s32.totalorder %s29, 1
      %s31 = scalar_select %p30, 0, %s29
      %s32 = ssub.s32 %s19, %s31
      %s33 = ssub.s32 %s20, %s27
      %s34 = sor.u32 %s32, %s33
      %p35 = scmp.eq.s32.totalorder %s34, 0
      %s37 = sadd.s32 %s36, 1
      %s38 = scalar_select %p35, %s36, %s37
      %p41 = pneg %p35
      %p42 = scmp.eq.s32.totalorder %s12, 1
      %p43 = por %p41, %p42
      %p44 = scmp.ne.s32.totalorder %s36, %s39
      %p45 = scmp.eq.s32.totalorder %s12, 0
      %p46 = por %p44, %p45
      %p47 = scmp.ne.s32.totalorder %s36, %s39
      %p48 = scmp.eq.s32.totalorder %s17, 1
      %p49 = por %p47, %p48
      %p50 = scmp.ne.s32.totalorder %s39, %s40
      %p51 = scmp.eq.s32.totalorder %s17, 0
      %p52 = por %p50, %p51
      %p53 = scmp.ne.s32.totalorder %s39, %s40
      %p54 = scmp.eq.s32.totalorder %s18, 1
      %p55 = por %p53, %p54
      %p57 = scmp.ne.s32.totalorder %s40, %s56
      %p58 = scmp.eq.s32.totalorder %s18, 0
      %p59 = por %p57, %p58
      %s61 = sadd.s32 %s60, 1
      %p64 = scmp.eq.s32.totalorder %s12, 1
      %p65 = scmp.ne.s32.totalorder %s60, %s62
      %p66 = scmp.eq.s32.totalorder %s12, 0
      %p67 = por %p65, %p66
      %p68 = scmp.ne.s32.totalorder %s60, %s62
      %p69 = scmp.eq.s32.totalorder %s17, 1
      %p70 = por %p68, %p69
      %p71 = scmp.ne.s32.totalorder %s62, %s63
      %p72 = scmp.eq.s32.totalorder %s17, 0
      %p73 = por %p71, %p72
      %p74 = scmp.ne.s32.totalorder %s62, %s63
      %p75 = scmp.eq.s32.totalorder %s18, 1
      %p76 = por %p74, %p75
      %p78 = scmp.ne.s32.totalorder %s63, %s77
      %p79 = scmp.eq.s32.totalorder %s18, 0
      %p80 = por %p78, %p79
      %s82 = sadd.s32 %s81, 1
      %p85 = scmp.eq.s32.totalorder %s12, 1
      %p86 = scmp.ne.s32.totalorder %s81, %s83
      %p87 = scmp.eq.s32.totalorder %s12, 0
      %p88 = por %p86, %p87
      %p89 = scmp.ne.s32.totalorder %s81, %s83
      %p90 = scmp.eq.s32.totalorder %s17, 1
      %p91 = por %p89, %p90
      %p92 = scmp.ne.s32.totalorder %s83, %s84
      %p93 = scmp.eq.s32.totalorder %s17, 0
      %p94 = por %p92, %p93
      %p95 = scmp.ne.s32.totalorder %s83, %s84
      %p96 = scmp.eq.s32.totalorder %s18, 1
      %p97 = por %p95, %p96
      %p99 = scmp.ne.s32.totalorder %s84, %s98
      %p100 = scmp.eq.s32.totalorder %s18, 0
      %p101 = por %p99, %p100
      %s102 = ssub.s32 %s19, %s31
      %s103 = ssub.s32 %s20, %s27
      %s104 = sor.u32 %s102, %s103
      %p105 = scmp.eq.s32.totalorder %s104, 0
      %s107 = sadd.s32 %s106, 1
      %s108 = scalar_select %p105, %s106, %s107
      %p111 = pneg %p105
      %p112 = scmp.eq.s32.totalorder %s12, 1
      %p113 = por %p111, %p112
      %p114 = scmp.ne.s32.totalorder %s106, %s109
      %p115 = scmp.eq.s32.totalorder %s12, 0
      %p116 = por %p114, %p115
      %p117 = scmp.ne.s32.totalorder %s106, %s109
      %p118 = scmp.eq.s32.totalorder %s17, 1
      %p119 = por %p117, %p118
      %p120 = scmp.ne.s32.totalorder %s109, %s110
      %p121 = scmp.eq.s32.totalorder %s17, 0
      %p122 = por %p120, %p121
      %p123 = scmp.ne.s32.totalorder %s109, %s110
      %p124 = scmp.eq.s32.totalorder %s18, 1
      %p125 = por %p123, %p124
      %p127 = scmp.ne.s32.totalorder %s110, %s126
      %p128 = scmp.eq.s32.totalorder %s18, 0
      %p129 = por %p127, %p128
      %p130 = scmp.le.s32.totalorder 1, %s12
      %p131 = scmp.lt.s32.totalorder %s12, 3
      %p132 = pnand %p130, %p131
      %p133 = pneg %p132
      // Predicated region
      $region9: #{tpu_custom_call.1} parent=5 // pred_check
        _
      $region10: #{tpu_custom_call.1} parent=5 // pred_check_branch
        %135 = sbr.rel (%p132) target = $region12
      $region11: #{tpu_custom_call.1} parent=5 // pred_region
        %s136 = ssub.s32 %s12, 1
        // Predicated region
        $region13: #{tpu_custom_call.1} parent=11 // pred_check
          %p137 = pneg %p73
        $region14: #{tpu_custom_call.1} parent=11 // pred_check_branch
          %139 = sbr.rel (%p137) target = $region16
        $region15: #{tpu_custom_call.1} parent=11 // pred_region
          _
        $region16: #{tpu_custom_call.1} parent=11 // pred_fallthru
          _
        // Predicated region
        $region17: #{tpu_custom_call.1} parent=11 // pred_check
          %p140 = pneg %p94
        $region18: #{tpu_custom_call.1} parent=11 // pred_check_branch
          %142 = sbr.rel (%p140) target = $region20
        $region19: #{tpu_custom_call.1} parent=11 // pred_region
          _
        $region20: #{tpu_custom_call.1} parent=11 // pred_fallthru
          _
      $region12: #{tpu_custom_call.1} parent=5 // pred_fallthru
        _
      %p143 = scmp.lt.s32.totalorder %s12, 2
      // Predicated region
      $region21: #{tpu_custom_call.1} parent=5 // pred_check
        %p144 = pneg %p143
      $region22: #{tpu_custom_call.1} parent=5 // pred_check_branch
        %146 = sbr.rel (%p144) target = $region24
      $region23: #{tpu_custom_call.1} parent=5 // pred_region
        // Predicated region
        $region25: #{tpu_custom_call.1} parent=23 // pred_check
          %p147 = pneg %p46
        $region26: #{tpu_custom_call.1} parent=23 // pred_check_branch
          %149 = sbr.rel (%p147) target = $region28
        $region27: #{tpu_custom_call.1} parent=23 // pred_region
          %s150 = sand.u32 %s36, 1
          %s151 = sand.u32 %s36, 1
          %s152 = smul.addr %s151, 64
          %s153 = scalar_lea.vmem [#allocation2], %s152
          %s154 = smul.u32 2, %s19
          %s155 = smul.addr %s154, 8
          %s156 = sadd.s32 %s20, %s155
          %s157 = smul.addr %s156, 8
          %s158 = scalar_lea.vmem %s0, %s157
          // Predicated region
          $region29: #{tpu_custom_call.1} parent=27 // pred_check
            _
          $region30: #{tpu_custom_call.1} parent=27 // pred_check_branch
            %160 = sbr.rel (0) target = $region32
          $region31: #{tpu_custom_call.1} parent=27 // pred_region
            // Predicated region
            $region33: #{tpu_custom_call.1} parent=31 // pred_check
              _
            $region34: #{tpu_custom_call.1} parent=31 // pred_check_branch
              %162 = sbr.rel (0) target = $region36
            $region35: #{tpu_custom_call.1} parent=31 // pred_region
              // Predicated region
              $region48: #{tpu_custom_call.1} parent=35 // pred_check
                _
              $region49: #{tpu_custom_call.1} parent=35 // pred_check_branch
                %191 = sbr.rel (0) target = $region51
              $region50: #{tpu_custom_call.1} parent=35 // pred_region
                loop: start=0, step=1, limit=1
                $region52: #{tpu_custom_call.1} parent=50 // loop_pre_header
                  _
                $region53: #{tpu_custom_call.1} parent=50 // loop_header
                  %s193 = sphi 0, %s197
                  %p194 = scmp.ge.s32.totalorder %s193, 1
                  %s198 = sphi %s158, %s158
                  %s199 = sphi %s153, %s153
                $region54: #{tpu_custom_call.1} parent=50 // loop_header_branch
                  %196 = sbr.rel (%p194) target = $region58
                $region55: #{tpu_custom_call.1} parent=50 // loop_body
                  %v200 = vld [vmem:[%s198] sm:$0xff]
                  %201 = vst [vmem:[%s199] sm:$0xff] %v200
                  %v202 = vld [vmem:[%s198 + $0x10] sm:$0xff]
                  %203 = vst [vmem:[%s199 + $0x8] sm:$0xff] %v202
                  %v204 = vld [vmem:[%s198 + $0x20] sm:$0xff]
                  %205 = vst [vmem:[%s199 + $0x10] sm:$0xff] %v204
                  %v206 = vld [vmem:[%s198 + $0x30] sm:$0xff]
                  %207 = vst [vmem:[%s199 + $0x18] sm:$0xff] %v206
                  %v208 = vld [vmem:[%s198 + $0x40] sm:$0xff]
                  %209 = vst [vmem:[%s199 + $0x20] sm:$0xff] %v208
                  %v210 = vld [vmem:[%s198 + $0x50] sm:$0xff]
                  %211 = vst [vmem:[%s199 + $0x28] sm:$0xff] %v210
                  %v212 = vld [vmem:[%s198 + $0x60] sm:$0xff]
                  %213 = vst [vmem:[%s199 + $0x30] sm:$0xff] %v212
                  %v214 = vld [vmem:[%s198 + $0x70] sm:$0xff]
                  %215 = vst [vmem:[%s199 + $0x38] sm:$0xff] %v214
                $region56: #{tpu_custom_call.1} parent=50 // loop_footer
                  %s197 = sadd.s32 1, %s193
                $region57: #{tpu_custom_call.1} parent=50 // loop_footer_branch
                  %192 = sbr.rel target = $region53
                $region58: #{tpu_custom_call.1} parent=50 // loop_exit
                  _
              $region51: #{tpu_custom_call.1} parent=35 // pred_fallthru
                _
              // Predicated region
              $region59: #{tpu_custom_call.1} parent=35 // pred_check
                _
              $region60: #{tpu_custom_call.1} parent=35 // pred_check_branch
                %217 = sbr.rel target = $region62
              $region61: #{tpu_custom_call.1} parent=35 // pred_region
                _
              $region62: #{tpu_custom_call.1} parent=35 // pred_fallthru
                _
            $region36: #{tpu_custom_call.1} parent=31 // pred_fallthru
              _
            // Predicated region
            $region37: #{tpu_custom_call.1} parent=31 // pred_check
              _
            $region38: #{tpu_custom_call.1} parent=31 // pred_check_branch
              %164 = sbr.rel target = $region40
            $region39: #{tpu_custom_call.1} parent=31 // pred_region
              loop: start=0, step=1, limit=1
              $region41: #{tpu_custom_call.1} parent=39 // loop_pre_header
                _
              $region42: #{tpu_custom_call.1} parent=39 // loop_header
                %s167 = sphi 0, %s171
                %p168 = scmp.ge.s32.totalorder %s167, 1
                %s172 = sphi %s158, %s158
                %s173 = sphi %s153, %s153
              $region43: #{tpu_custom_call.1} parent=39 // loop_header_branch
                %170 = sbr.rel (%p168) target = $region47
              $region44: #{tpu_custom_call.1} parent=39 // loop_body
                %v174 = vld [vmem:[%s172] sm:$0xff]
                %175 = vst [vmem:[%s173] sm:$0xff] %v174
                %v176 = vld [vmem:[%s172 + $0x10] sm:$0xff]
                %177 = vst [vmem:[%s173 + $0x8] sm:$0xff] %v176
                %v178 = vld [vmem:[%s172 + $0x20] sm:$0xff]
                %179 = vst [vmem:[%s173 + $0x10] sm:$0xff] %v178
                %v180 = vld [vmem:[%s172 + $0x30] sm:$0xff]
                %181 = vst [vmem:[%s173 + $0x18] sm:$0xff] %v180
                %v182 = vld [vmem:[%s172 + $0x40] sm:$0xff]
                %183 = vst [vmem:[%s173 + $0x20] sm:$0xff] %v182
                %v184 = vld [vmem:[%s172 + $0x50] sm:$0xff]
                %185 = vst [vmem:[%s173 + $0x28] sm:$0xff] %v184
                %v186 = vld [vmem:[%s172 + $0x60] sm:$0xff]
                %187 = vst [vmem:[%s173 + $0x30] sm:$0xff] %v186
                %v188 = vld [vmem:[%s172 + $0x70] sm:$0xff]
                %189 = vst [vmem:[%s173 + $0x38] sm:$0xff] %v188
              $region45: #{tpu_custom_call.1} parent=39 // loop_footer
                %s171 = sadd.s32 1, %s167
              $region46: #{tpu_custom_call.1} parent=39 // loop_footer_branch
                %166 = sbr.rel target = $region42
              $region47: #{tpu_custom_call.1} parent=39 // loop_exit
                _
            $region40: #{tpu_custom_call.1} parent=31 // pred_fallthru
              _
          $region32: #{tpu_custom_call.1} parent=27 // pred_fallthru
            _
          %218 = vnop
        $region28: #{tpu_custom_call.1} parent=23 // pred_fallthru
          _
      $region24: #{tpu_custom_call.1} parent=5 // pred_fallthru
        _
      %p219 = scmp.le.s32.totalorder 1, %s12
      %p220 = scmp.lt.s32.totalorder %s12, 3
      %p221 = pnand %p219, %p220
      %p222 = pneg %p221
      // Predicated region
      $region63: #{tpu_custom_call.1} parent=5 // pred_check
        _
      $region64: #{tpu_custom_call.1} parent=5 // pred_check_branch
        %224 = sbr.rel (%p221) target = $region66
      $region65: #{tpu_custom_call.1} parent=5 // pred_region
        %s225 = ssub.s32 %s12, 1
        %s226 = sand.u32 %s39, 1
        %s227 = sand.u32 %s39, 1
        %s228 = smul.addr %s227, 64
        %s229 = scalar_lea.vmem [#allocation2], %s228
        // Predicated region
        $region67: #{tpu_custom_call.1} parent=65 // pred_check
          %p230 = pneg %p52
        $region68: #{tpu_custom_call.1} parent=65 // pred_check_branch
          %232 = sbr.rel (%p230) target = $region70
        $region69: #{tpu_custom_call.1} parent=65 // pred_region
          _
        $region70: #{tpu_custom_call.1} parent=65 // pred_fallthru
          _
        %s233 = sand.u32 %s39, 1
        %s234 = sand.u32 %s39, 1
        %s235 = smul.addr %s234, 64
        %s236 = scalar_lea.vmem [#allocation2], %s235
        %p237 = pneg %p52
        %p238 = pneg %p49
        %p239 = pneg %p73
        %p240 = pneg %p70
        %p241 = pneg %p94
        %p242 = pneg %p91
        %p243 = pneg %p122
        %p244 = pneg %p119
        %s245 = sand.u32 %s109, 1
        %s246 = scalar_lea.sflag [#allocation4], %s245
        %s247 = sand.u32 %s109, 1
        %s248 = smul.addr %s247, 64
        %s249 = scalar_lea.vmem [#allocation3], %s248
        %s250 = smul.u32 2, %s21
        %s251 = smul.u32 2, %s21
        %v252 = vld [vmem:[%s1] sm:$0xff]
        %v253 = vld [vmem:[%s1 + $0x8] sm:$0xff]
        %v254 = vld [vmem:[%s1 + $0x10] sm:$0xff]
        %v255 = vld [vmem:[%s1 + $0x18] sm:$0xff]
        %v256 = vld [vmem:[%s1 + $0x20] sm:$0xff]
        %v257 = vld [vmem:[%s1 + $0x28] sm:$0xff]
        %v258 = vld [vmem:[%s1 + $0x30] sm:$0xff]
        %v259 = vld [vmem:[%s1 + $0x38] sm:$0xff]
        %v260 = vld [vmem:[%s2] sm:$0xff]
        %v261 = vld [vmem:[%s2 + $0x8] sm:$0xff]
        %v262 = vld [vmem:[%s2 + $0x10] sm:$0xff]
        %v263 = vld [vmem:[%s2 + $0x18] sm:$0xff]
        %v264 = vld [vmem:[%s2 + $0x20] sm:$0xff]
        %v265 = vld [vmem:[%s2 + $0x28] sm:$0xff]
        %v266 = vld [vmem:[%s2 + $0x30] sm:$0xff]
        %v267 = vld [vmem:[%s2 + $0x38] sm:$0xff]
        %v268 = vld [vmem:[%s229] sm:$0xff]
        %v269 = vld [vmem:[%s229 + $0x8] sm:$0xff]
        %v270 = vld [vmem:[%s229 + $0x10] sm:$0xff]
        %v271 = vld [vmem:[%s229 + $0x18] sm:$0xff]
        %273 = vset.pattern.permute.xlu0 0
        %274 = vperm.xlu0 %273, %v260
        %v275 = vpop.permute.xlu0 %274
        %278 = vset.pattern.permute.xlu0 0
        %279 = vperm.xlu0 %278, %v261
        %v280 = vpop.permute.xlu0 %279
        %283 = vset.pattern.permute.xlu0 0
        %284 = vperm.xlu0 %283, %v262
        %v285 = vpop.permute.xlu0 %284
        %288 = vset.pattern.permute.xlu0 0
        %289 = vperm.xlu0 %288, %v263
        %v290 = vpop.permute.xlu0 %289
        %293 = vset.pattern.permute.xlu0 0
        %294 = vperm.xlu0 %293, %v264
        %v295 = vpop.permute.xlu0 %294
        %298 = vset.pattern.permute.xlu0 0
        %299 = vperm.xlu0 %298, %v265
        %v300 = vpop.permute.xlu0 %299
        %303 = vset.pattern.permute.xlu0 0
        %304 = vperm.xlu0 %303, %v266
        %v305 = vpop.permute.xlu0 %304
        %308 = vset.pattern.permute.xlu0 0
        %309 = vperm.xlu0 %308, %v267
        %v310 = vpop.permute.xlu0 %309
        %vm312 = vcmask 261120
        %v314 = vsel %vm312, %v252, 0
        %v317 = vsel %vm312, %v253, 0
        %v320 = vsel %vm312, %v254, 0
        %v323 = vsel %vm312, %v255, 0
        %v326 = vsel %vm312, %v256, 0
        %v329 = vsel %vm312, %v257, 0
        %v332 = vsel %vm312, %v258, 0
        %v335 = vsel %vm312, %v259, 0
        %337 = vmatprep.subr.mxu0 0.0
        %338 = vmatpush1.msra.mxu0 %v268
        %339 = vmatprep.subr.mxu0 0.0
        %340 = vmatpush1.msra.mxu0 %v269
        %341 = vmatprep.subr.mxu0 0.0
        %342 = vmatpush1.msra.mxu0 %v270
        %343 = vmatprep.subr.mxu0 0.0
        %344 = vmatpush1.msra.mxu0 %v271
        %345 = vmatprep.subr.mxu0 0.0
        %346 = vmatpush1.msra.mxu0 0.0
        %347 = vmatprep.subr.mxu0 0.0
        %348 = vmatpush1.msra.mxu0 0.0
        %349 = vmatprep.subr.mxu0 0.0
        %350 = vmatpush1.msra.mxu0 0.0
        %351 = vmatprep.subr.mxu0 0.0
        %352 = vmatpush1.msra.mxu0 0.0
        %353 = vmatprep.subr.mxu0 0.0
        %354 = vmatpush1.msra.mxu0 0.0
        %355 = vmatprep.subr.mxu0 0.0
        %356 = vmatpush1.msra.mxu0 0.0
        %357 = vmatprep.subr.mxu0 0.0
        %358 = vmatpush1.msra.mxu0 0.0
        %359 = vmatprep.subr.mxu0 0.0
        %360 = vmatpush1.msra.mxu0 0.0
        %361 = vmatprep.subr.mxu0 0.0
        %362 = vmatpush1.msra.mxu0 0.0
        %363 = vmatprep.subr.mxu0 0.0
        %364 = vmatpush1.msra.mxu0 0.0
        %365 = vmatprep.subr.mxu0 0.0
        %366 = vmatpush1.msra.mxu0 0.0
        %367 = vmatprep.subr.mxu0 0.0
        %368 = vmatpush1.msra.mxu0 0.0
        %369 = vmatprep.subr.mxu0 0.0
        %370 = vmatpush1.msra.mxu0 0.0
        %371 = vmatprep.subr.mxu0 0.0
        %372 = vmatpush1.msra.mxu0 0.0
        %373 = vmatprep.subr.mxu0 0.0
        %374 = vmatpush1.msra.mxu0 0.0
        %375 = vmatprep.subr.mxu0 0.0
        %376 = vmatpush1.msra.mxu0 0.0
        %377 = vmatprep.subr.mxu0 0.0
        %378 = vmatpush1.msra.mxu0 0.0
        %379 = vmatprep.subr.mxu0 0.0
        %380 = vmatpush1.msra.mxu0 0.0
        %381 = vmatprep.subr.mxu0 0.0
        %382 = vmatpush1.msra.mxu0 0.0
        %383 = vmatprep.subr.mxu0 0.0
        %384 = vmatpush1.msra.mxu0 0.0
        %385 = vmatprep.subr.mxu0 0.0
        %386 = vmatpush1.msra.mxu0 0.0
        %387 = vmatprep.subr.mxu0 0.0
        %388 = vmatpush1.msra.mxu0 0.0
        %389 = vmatprep.subr.mxu0 0.0
        %390 = vmatpush1.msra.mxu0 0.0
        %391 = vmatprep.subr.mxu0 0.0
        %392 = vmatpush1.msra.mxu0 0.0
        %393 = vmatprep.subr.mxu0 0.0
        %394 = vmatpush1.msra.mxu0 0.0
        %395 = vmatprep.subr.mxu0 0.0
        %396 = vmatpush1.msra.mxu0 0.0
        %397 = vmatprep.subr.mxu0 0.0
        %398 = vmatpush1.msra.mxu0 0.0
        %399 = vmatprep.subr.mxu0 0.0
        %400 = vmatpush1.msra.mxu0 0.0
        %401 = vmatprep.mubr.f32.mxu0 0.0
        %402 = vmatmul.mubr.f32.gmra.mrb[0].mxu0 %v314
        %v403 = vpop.f32.mrb[0].mxu0
        %v404 = vadd.f32 %v275, %v403
        %v405 = vpop.f32.mrb[0].mxu0
        %406 = vmatprep.mubr.f32.mxu0 0.0
        %407 = vmatmul.mubr.f32.gmra.mrb[0].mxu0 %v317
        %v408 = vpop.f32.mrb[0].mxu0
        %v409 = vadd.f32 %v280, %v408
        %v410 = vpop.f32.mrb[0].mxu0
        %411 = vmatprep.mubr.f32.mxu0 0.0
        %412 = vmatmul.mubr.f32.gmra.mrb[0].mxu0 %v320
        %v413 = vpop.f32.mrb[0].mxu0
        %v414 = vadd.f32 %v285, %v413
        %v415 = vpop.f32.mrb[0].mxu0
        %416 = vmatprep.mubr.f32.mxu0 0.0
        %417 = vmatmul.mubr.f32.gmra.mrb[0].mxu0 %v323
        %v418 = vpop.f32.mrb[0].mxu0
        %v419 = vadd.f32 %v290, %v418
        %v420 = vpop.f32.mrb[0].mxu0
        %421 = vmatprep.mubr.f32.mxu0 0.0
        %422 = vmatmul.mubr.f32.gmra.mrb[0].mxu0 %v326
        %v423 = vpop.f32.mrb[0].mxu0
        %v424 = vadd.f32 %v295, %v423
        %v425 = vpop.f32.mrb[0].mxu0
        %426 = vmatprep.mubr.f32.mxu0 0.0
        %427 = vmatmul.mubr.f32.gmra.mrb[0].mxu0 %v329
        %v428 = vpop.f32.mrb[0].mxu0
        %v429 = vadd.f32 %v300, %v428
        %v430 = vpop.f32.mrb[0].mxu0
        %431 = vmatprep.mubr.f32.mxu0 0.0
        %432 = vmatmul.mubr.f32.gmra.mrb[0].mxu0 %v332
        %v433 = vpop.f32.mrb[0].mxu0
        %v434 = vadd.f32 %v305, %v433
        %v435 = vpop.f32.mrb[0].mxu0
        %436 = vmatprep.mubr.f32.mxu0 0.0
        %437 = vmatmul.mubr.f32.gmra.mrb[0].mxu0 %v335
        %v438 = vpop.f32.mrb[0].mxu0
        %v439 = vadd.f32 %v310, %v438
        %v440 = vpop.f32.mrb[0].mxu0
        %441 = vdwg.mxu0
        %v442 = vxor.u32 %v424, 2147483648
        %v443 = vxor.u32 %v429, 2147483648
        %v444 = vxor.u32 %v434, 2147483648
        %v445 = vxor.u32 %v439, 2147483648
        %v446 = vmul.f32 %v442, 1.442695
        %v447 = vpow.pop %v446
        %v448 = vmul.f32 %v443, 1.442695
        %v449 = vpow.pop %v448
        %v450 = vmul.f32 %v444, 1.442695
        %v451 = vpow.pop %v450
        %v452 = vmul.f32 %v445, 1.442695
        %v453 = vpow.pop %v452
        %v454 = vadd.f32 %v447, 1.0
        %v455 = vadd.f32 %v449, 1.0
        %v456 = vadd.f32 %v451, 1.0
        %v457 = vadd.f32 %v453, 1.0
        %v458 = vrcp.pop %v454
        %v459 = vmul.f32 1.0, %v458
        %v460 = vrcp.pop %v455
        %v461 = vmul.f32 1.0, %v460
        %v462 = vrcp.pop %v456
        %v463 = vmul.f32 1.0, %v462
        %v464 = vrcp.pop %v457
        %v465 = vmul.f32 1.0, %v464
        %v466 = vmul.f32 %v404, %v459
        %v467 = vmul.f32 %v409, %v461
        %v468 = vmul.f32 %v414, %v463
        %v469 = vmul.f32 %v419, %v465
        %470 = vst [vmem:[%s249] sm:$0xff] %v466
        %471 = vst [vmem:[%s249 + $0x8] sm:$0xff] %v467
        %472 = vst [vmem:[%s249 + $0x10] sm:$0xff] %v468
        %473 = vst [vmem:[%s249 + $0x18] sm:$0xff] %v469
        %s474 = scalar_lea.vmem %s229, 32 [#allocation2]
        %v475 = vld [vmem:[%s474] sm:$0xff]
        %v476 = vld [vmem:[%s474 + $0x8] sm:$0xff]
        %v477 = vld [vmem:[%s474 + $0x10] sm:$0xff]
        %v478 = vld [vmem:[%s474 + $0x18] sm:$0xff]
        %479 = vmatprep.subr.mxu0 0.0
        %480 = vmatpush1.msra.mxu0 %v475
        %481 = vmatprep.subr.mxu0 0.0
        %482 = vmatpush1.msra.mxu0 %v476
        %483 = vmatprep.subr.mxu0 0.0
        %484 = vmatpush1.msra.mxu0 %v477
        %485 = vmatprep.subr.mxu0 0.0
        %486 = vmatpush1.msra.mxu0 %v478
        %487 = vmatprep.subr.mxu0 0.0
        %488 = vmatpush1.msra.mxu0 0.0
        %489 = vmatprep.subr.mxu0 0.0
        %490 = vmatpush1.msra.mxu0 0.0
        %491 = vmatprep.subr.mxu0 0.0
        %492 = vmatpush1.msra.mxu0 0.0
        %493 = vmatprep.subr.mxu0 0.0
        %494 = vmatpush1.msra.mxu0 0.0
        %495 = vmatprep.subr.mxu0 0.0
        %496 = vmatpush1.msra.mxu0 0.0
        %497 = vmatprep.subr.mxu0 0.0
        %498 = vmatpush1.msra.mxu0 0.0
        %499 = vmatprep.subr.mxu0 0.0
        %500 = vmatpush1.msra.mxu0 0.0
        %501 = vmatprep.subr.mxu0 0.0
        %502 = vmatpush1.msra.mxu0 0.0
        %503 = vmatprep.subr.mxu0 0.0
        %504 = vmatpush1.msra.mxu0 0.0
        %505 = vmatprep.subr.mxu0 0.0
        %506 = vmatpush1.msra.mxu0 0.0
        %507 = vmatprep.subr.mxu0 0.0
        %508 = vmatpush1.msra.mxu0 0.0
        %509 = vmatprep.subr.mxu0 0.0
        %510 = vmatpush1.msra.mxu0 0.0
        %511 = vmatprep.subr.mxu0 0.0
        %512 = vmatpush1.msra.mxu0 0.0
        %513 = vmatprep.subr.mxu0 0.0
        %514 = vmatpush1.msra.mxu0 0.0
        %515 = vmatprep.subr.mxu0 0.0
        %516 = vmatpush1.msra.mxu0 0.0
        %517 = vmatprep.subr.mxu0 0.0
        %518 = vmatpush1.msra.mxu0 0.0
        %519 = vmatprep.subr.mxu0 0.0
        %520 = vmatpush1.msra.mxu0 0.0
        %521 = vmatprep.subr.mxu0 0.0
        %522 = vmatpush1.msra.mxu0 0.0
        %523 = vmatprep.subr.mxu0 0.0
        %524 = vmatpush1.msra.mxu0 0.0
        %525 = vmatprep.subr.mxu0 0.0
        %526 = vmatpush1.msra.mxu0 0.0
        %527 = vmatprep.subr.mxu0 0.0
        %528 = vmatpush1.msra.mxu0 0.0
        %529 = vmatprep.subr.mxu0 0.0
        %530 = vmatpush1.msra.mxu0 0.0
        %531 = vmatprep.subr.mxu0 0.0
        %532 = vmatpush1.msra.mxu0 0.0
        %533 = vmatprep.subr.mxu0 0.0
        %534 = vmatpush1.msra.mxu0 0.0
        %535 = vmatprep.subr.mxu0 0.0
        %536 = vmatpush1.msra.mxu0 0.0
        %537 = vmatprep.subr.mxu0 0.0
        %538 = vmatpush1.msra.mxu0 0.0
        %539 = vmatprep.subr.mxu0 0.0
        %540 = vmatpush1.msra.mxu0 0.0
        %541 = vmatprep.subr.mxu0 0.0
        %542 = vmatpush1.msra.mxu0 0.0
        %543 = vmatprep.mubr.f32.mxu0 0.0
        %544 = vmatmul.mubr.f32.gmra.mrb[0].mxu0 %v314
        %v545 = vpop.f32.mrb[0].mxu0
        %v546 = vadd.f32 %v275, %v545
        %v547 = vpop.f32.mrb[0].mxu0
        %548 = vmatprep.mubr.f32.mxu0 0.0
        %549 = vmatmul.mubr.f32.gmra.mrb[0].mxu0 %v317
        %v550 = vpop.f32.mrb[0].mxu0
        %v551 = vadd.f32 %v280, %v550
        %v552 = vpop.f32.mrb[0].mxu0
        %553 = vmatprep.mubr.f32.mxu0 0.0
        %554 = vmatmul.mubr.f32.gmra.mrb[0].mxu0 %v320
        %v555 = vpop.f32.mrb[0].mxu0
        %v556 = vadd.f32 %v285, %v555
        %v557 = vpop.f32.mrb[0].mxu0
        %558 = vmatprep.mubr.f32.mxu0 0.0
        %559 = vmatmul.mubr.f32.gmra.mrb[0].mxu0 %v323
        %v560 = vpop.f32.mrb[0].mxu0
        %v561 = vadd.f32 %v290, %v560
        %v562 = vpop.f32.mrb[0].mxu0
        %563 = vmatprep.mubr.f32.mxu0 0.0
        %564 = vmatmul.mubr.f32.gmra.mrb[0].mxu0 %v326
        %v565 = vpop.f32.mrb[0].mxu0
        %v566 = vadd.f32 %v295, %v565
        %v567 = vpop.f32.mrb[0].mxu0
        %568 = vmatprep.mubr.f32.mxu0 0.0
        %569 = vmatmul.mubr.f32.gmra.mrb[0].mxu0 %v329
        %v570 = vpop.f32.mrb[0].mxu0
        %v571 = vadd.f32 %v300, %v570
        %v572 = vpop.f32.mrb[0].mxu0
        %573 = vmatprep.mubr.f32.mxu0 0.0
        %574 = vmatmul.mubr.f32.gmra.mrb[0].mxu0 %v332
        %v575 = vpop.f32.mrb[0].mxu0
        %v576 = vadd.f32 %v305, %v575
        %v577 = vpop.f32.mrb[0].mxu0
        %578 = vmatprep.mubr.f32.mxu0 0.0
        %579 = vmatmul.mubr.f32.gmra.mrb[0].mxu0 %v335
        %v580 = vpop.f32.mrb[0].mxu0
        %v581 = vadd.f32 %v310, %v580
        %v582 = vpop.f32.mrb[0].mxu0
        %583 = vdwg.mxu0
        %v584 = vxor.u32 %v566, 2147483648
        %v585 = vxor.u32 %v571, 2147483648
        %v586 = vxor.u32 %v576, 2147483648
        %v587 = vxor.u32 %v581, 2147483648
        %v588 = vmul.f32 %v584, 1.442695
        %v589 = vpow.pop %v588
        %v590 = vmul.f32 %v585, 1.442695
        %v591 = vpow.pop %v590
        %v592 = vmul.f32 %v586, 1.442695
        %v593 = vpow.pop %v592
        %v594 = vmul.f32 %v587, 1.442695
        %v595 = vpow.pop %v594
        %v596 = vadd.f32 %v589, 1.0
        %v597 = vadd.f32 %v591, 1.0
        %v598 = vadd.f32 %v593, 1.0
        %v599 = vadd.f32 %v595, 1.0
        %v600 = vrcp.pop %v596
        %v601 = vmul.f32 1.0, %v600
        %v602 = vrcp.pop %v597
        %v603 = vmul.f32 1.0, %v602
        %v604 = vrcp.pop %v598
        %v605 = vmul.f32 1.0, %v604
        %v606 = vrcp.pop %v599
        %v607 = vmul.f32 1.0, %v606
        %v608 = vmul.f32 %v546, %v601
        %v609 = vmul.f32 %v551, %v603
        %v610 = vmul.f32 %v556, %v605
        %v611 = vmul.f32 %v561, %v607
        %s612 = scalar_lea.vmem %s249, 32 [#allocation3]
        %613 = vst [vmem:[%s612] sm:$0xff] %v608
        %614 = vst [vmem:[%s612 + $0x8] sm:$0xff] %v609
        %615 = vst [vmem:[%s612 + $0x10] sm:$0xff] %v610
        %616 = vst [vmem:[%s612 + $0x18] sm:$0xff] %v611
        %s617 = sand.u32 %s109, 1
        %s618 = scalar_lea.sflag [#allocation4], %s617
        %s619 = sand.u32 %s109, 1
        %s620 = smul.addr %s619, 64
        %s621 = scalar_lea.vmem [#allocation3], %s620
        // Predicated region
        $region71: #{tpu_custom_call.1} parent=65 // pred_check
          %p622 = pneg %p119
        $region72: #{tpu_custom_call.1} parent=65 // pred_check_branch
          %624 = sbr.rel (%p622) target = $region74
        $region73: #{tpu_custom_call.1} parent=65 // pred_region
          %s625 = smul.u32 2, %s21
          %s627 = ssub.s32 1024, 1024
          %628 = vsyncadd %s618, %s627
          %s629 = smul.addr %s625, 8
          %s630 = sadd.s32 %s22, %s629
          %s631 = smul.addr %s630, 128
          %s632 = scalar_lea.hbm %s3, %s631
          %s633 = sshll.u32 %s621, 4
          %s634 = int_to_ptr.vmem [resolvable:$true] %s633
          %639 = dma.vmem_to_hbm [thread:$0]  %s634, 1024, %s632, %s618, 128, 256, 8
        $region74: #{tpu_custom_call.1} parent=65 // pred_fallthru
          _
      $region66: #{tpu_custom_call.1} parent=5 // pred_fallthru
        _
      %p640 = scmp.le.s32.totalorder 2, %s12
      // Predicated region
      $region75: #{tpu_custom_call.1} parent=5 // pred_check
        %p641 = pneg %p640
      $region76: #{tpu_custom_call.1} parent=5 // pred_check_branch
        %643 = sbr.rel (%p641) target = $region78
      $region77: #{tpu_custom_call.1} parent=5 // pred_region
        %s644 = ssub.s32 %s12, 2
        // Predicated region
        $region79: #{tpu_custom_call.1} parent=77 // pred_check
          %p645 = pneg %p125
        $region80: #{tpu_custom_call.1} parent=77 // pred_check_branch
          %647 = sbr.rel (%p645) target = $region82
        $region81: #{tpu_custom_call.1} parent=77 // pred_region
          %s648 = sand.u32 %s110, 1
          %s649 = scalar_lea.sflag [#allocation4], %s648
          %s650 = sand.u32 %s110, 1
          %s651 = smul.addr %s650, 64
          %s652 = scalar_lea.vmem [#allocation3], %s651
          %653 = dma.done %s649, 1024
        $region82: #{tpu_custom_call.1} parent=77 // pred_fallthru
          _
      $region78: #{tpu_custom_call.1} parent=5 // pred_fallthru
        _
    $region6: #{tpu_custom_call.1} parent=1 // loop_footer
      %s16 = sadd.s32 1, %s12
    $region7: #{tpu_custom_call.1} parent=1 // loop_footer_branch
      %11 = sbr.rel target = $region3
    $region8: #{tpu_custom_call.1} parent=1 // loop_exit
      _
    %654 = vsyncpa [#allocation4], 1
    %s655 = scalar_lea.sflag [#allocation4], 1
    %656 = vsyncpa %s655, 1

</llo_original>
